<compile_context>
chip_gen: v6e
topology: v6e:2x2x1
jax: 0.10.0
libtpu: 0.0.40
codegen_flags: <defaults>
</compile_context>

<pallas_src>
import functools

import jax
import jax.numpy as jnp
from jax.experimental import pallas as pl
from jax.experimental.pallas import tpu as pltpu

LN_EPS = 1e-5  # matches torch.nn.LayerNorm default


def _round_up(n, m):
    return ((n + m - 1) // m) * m


def _bspec(shape, index_map, bufs=None):
    """BlockSpec with an optional explicit buffer count (safe fallback if the
    running jax version does not accept pipeline_mode)."""
    if bufs is not None and hasattr(pl, "Buffered"):
        try:
            return pl.BlockSpec(shape, index_map, pipeline_mode=pl.Buffered(bufs))
        except Exception:
            pass
    return pl.BlockSpec(shape, index_map)


def _layernorm(h, gamma, beta, *, d_true):
    """Centered two-pass LayerNorm over the (zero-padded) lane axis.

    Padded feature lanes of `h` are exactly zero, so the centered sum of squares
    over-counts by n_pad * mu^2; subtract that and divide by the TRUE feature
    count.  gamma/beta are zero in padded lanes -> padded lanes stay exactly zero.
    """
    d_pad = h.shape[-1]
    n_pad = float(d_pad - d_true)
    mu = jnp.sum(h, axis=-1, keepdims=True) * (1.0 / d_true)
    c = h - mu
    ss = jnp.sum(c * c, axis=-1, keepdims=True) - n_pad * (mu * mu)
    var = jnp.maximum(ss * (1.0 / d_true), 0.0)
    return c * jax.lax.rsqrt(var + LN_EPS) * gamma + beta


def _silu(h):
    # One logistic EUP op per element (vs exp + reciprocal = 2 EUP-slot ops).
    return h * jax.nn.sigmoid(h)


# ----------------------------------------------------------------------------- #
# Path 1: "resident" - all weights in VMEM, residual blocks unrolled in-kernel.
# ----------------------------------------------------------------------------- #
def _resident_kernel(
    x_ref,                # [BM, Din_p]
    ln1g_ref, ln1b_ref,   # [1, Din_p]
    w1_ref, b1_ref,       # [Din_p, H_p], [1, H_p]
    blng_ref, blnb_ref,   # [NB, 1, H_p]
    bw_ref, bb_ref,       # [NB, H_p, H_p], [NB, 1, H_p]
    ln2g_ref, ln2b_ref,   # [1, H_p]
    w2_ref, b2_ref,       # [H_p, Dout_p], [1, Dout_p]
    o_ref,                # [BM, Dout_p]
    *, d_in, d_h, num_blocks, mxu_dtype,
):
    x = x_ref[...].astype(jnp.float32)
    h = _layernorm(x, ln1g_ref[...], ln1b_ref[...], d_true=d_in)
    h = jnp.dot(h.astype(mxu_dtype), w1_ref[...],
                preferred_element_type=jnp.float32) + b1_ref[...]
    h = _silu(h)

    def block(i, h):
        t = _layernorm(h, blng_ref[i], blnb_ref[i], d_true=d_h)
        t = jnp.dot(t.astype(mxu_dtype), bw_ref[i],
                    preferred_element_type=jnp.float32) + bb_ref[i]
        return _silu(t) + h

    if num_blocks > 0:
        # Unrolled: LLO can overlap LN/SiLU of block i with the matmul of block i+1.
        h = jax.lax.fori_loop(0, num_blocks, block, h, unroll=True)

    h = _layernorm(h, ln2g_ref[...], ln2b_ref[...], d_true=d_h)
    out = jnp.dot(h.astype(mxu_dtype), w2_ref[...],
                  preferred_element_type=jnp.float32) + b2_ref[...]
    o_ref[...] = out.astype(o_ref.dtype)


# ----------------------------------------------------------------------------- #
# Path 2: "stream" - residual-block weights streamed on an inner grid axis.
# ----------------------------------------------------------------------------- #
def _stream_kernel(
    x_ref,                # [BM, Din_p]
    ln1g_ref, ln1b_ref,   # [1, Din_p]
    w1_ref, b1_ref,       # [Din_p, H_p], [1, H_p]
    blng_ref, blnb_ref,   # [1, 1, H_p]   (residual block j slice)
    bw_ref, bb_ref,       # [1, H_p, H_p], [1, 1, H_p]
    ln2g_ref, ln2b_ref,   # [1, H_p]
    w2_ref, b2_ref,       # [H_p, Dout_p], [1, Dout_p]
    o_ref,                # [BM, Dout_p]
    h_ref,                # VMEM scratch [BM, H_p] f32 (persists across j)
    *, d_in, d_h, mxu_dtype,
):
    j = pl.program_id(1)

    # Prologue (first block step only): LayerNorm1 -> fc1 -> SiLU.
    @pl.when(j == 0)
    def _():
        x = x_ref[...].astype(jnp.float32)
        h = _layernorm(x, ln1g_ref[...], ln1b_ref[...], d_true=d_in)
        h = jnp.dot(h.astype(mxu_dtype), w1_ref[...],
                    preferred_element_type=jnp.float32) + b1_ref[...]
        h_ref[...] = _silu(h)

    # Residual block j (its weights are streamed in via the j grid axis).
    h_in = h_ref[...]
    t = _layernorm(h_in, blng_ref[0], blnb_ref[0], d_true=d_h)
    t = jnp.dot(t.astype(mxu_dtype), bw_ref[0],
                preferred_element_type=jnp.float32) + bb_ref[0]
    h_ref[...] = _silu(t) + h_in

    # Epilogue (last block step): LayerNorm2 -> fc2 -> write output tile.
    @pl.when(j == pl.num_programs(1) - 1)
    def _():
        h = _layernorm(h_ref[...], ln2g_ref[...], ln2b_ref[...], d_true=d_h)
        out = jnp.dot(h.astype(mxu_dtype), w2_ref[...],
                      preferred_element_type=jnp.float32) + b2_ref[...]
        o_ref[...] = out.astype(o_ref.dtype)


# ----------------------------------------------------------------------------- #
# Wrapper
# ----------------------------------------------------------------------------- #
def _pad_to(a, shape, dtype):
    out = jnp.zeros(shape, dtype)
    return out.at[tuple(slice(0, s) for s in a.shape)].set(a.astype(dtype))


def _vmem_budget_bytes():
    cap = 0
    try:
        cap = int(pltpu.get_tpu_info().vmem_capacity_bytes)
    except Exception:
        cap = 0
    if cap <= 0:
        cap = 64 * 2**20  # conservative default: v7x per-TC VMEM
    # Leave headroom for compiler-internal scratch:
    #   64 MiB (v7x)  -> ~56 MiB usable;  128 MiB (v5e/v6e) -> ~112 MiB usable.
    return cap - max(8 * 2**20, cap // 8)


def mlp_resnet_forward(x, params, *, block_m=256, mxu_dtype=jnp.bfloat16, path="auto"):
    B, Din = x.shape
    H = params["w1"].shape[1]
    Dout = params["w2"].shape[1]
    NB = int(params["blk_w"].shape[0])

    f32 = jnp.float32
    bpe = jnp.dtype(mxu_dtype).itemsize

    # Lane-dense feature dims (multiples of 128).
    Din_p, H_p, Dout_p = (_round_up(d, 128) for d in (Din, H, Dout))
    budget = _vmem_budget_bytes()

    # ---- path selection: resident weights when they fit in ~half the budget ----
    resident_w_bytes = (Din_p * H_p + NB * H_p * H_p + H_p * Dout_p) * bpe
    if path == "auto":
        path = "resident" if (NB == 0 or resident_w_bytes <= budget // 2) else "stream"
    assert path in ("resident", "stream")
    if path == "stream":
        assert NB >= 1, "stream path needs at least one residual block"

    # ---- honest VMEM estimates (bytes) as a function of the batch tile ----
    small_vecs = (2 * Din_p + (3 * max(NB, 1) + 4) * H_p + 2 * Dout_p) * 4
    slack = 2 * 2**20  # compiler-internal scratch headroom

    def est_resident(bm):
        act = bm * (2 * Din_p + 4 * H_p + 2 * Dout_p) * 4
        return act + resident_w_bytes + small_vecs + slack

    def est_stream(bm, bw_bufs):
        act = bm * (2 * Din_p + 4 * H_p + Dout_p) * 4
        wts = (Din_p * H_p + H_p * Dout_p) * bpe + bw_bufs * H_p * H_p * bpe
        return act + wts + small_vecs + slack

    # ---- batch tile: big (256 fills a 256x256 MXU and amortizes weight streaming),
    #      multiple of 8, clamped to the batch, shrunk until the estimate fits the
    #      per-generation VMEM budget (v7x-safe). ----
    bm = max(8, min(_round_up(block_m, 8), _round_up(B, 8)))
    est_fn = est_resident if path == "resident" else (lambda m: est_stream(m, 2))
    while bm > 8 and est_fn(bm) > budget:
        bm = max(8, _round_up(bm // 2, 8))
    B_p = _round_up(B, bm)

    # TODO(synk): on v7x with H_p >= ~2048, panel-tile the streamed [H,H] weight
    # (extra N/K grid axis) so double-buffering fits in 64 MiB VMEM.
    # TODO(synk): when B_p // bm == 1 on v7x, optionally halve bm so both
    # TensorCores get a batch tile (only wins when not weight-bandwidth-bound).

    # ---- zero-pad activations / params (zero pads keep padded lanes exact) ----
    nb_p = max(NB, 1)
    xp = _pad_to(x, (B_p, Din_p), f32)
    ln1g = _pad_to(params["ln1_g"], (1, Din_p), f32)
    ln1b = _pad_to(params["ln1_b"], (1, Din_p), f32)
    w1 = _pad_to(params["w1"], (Din_p, H_p), mxu_dtype)
    b1 = _pad_to(params["b1"], (1, H_p), f32)
    blng = _pad_to(params["blk_ln_g"], (nb_p, 1, H_p), f32)
    blnb = _pad_to(params["blk_ln_b"], (nb_p, 1, H_p), f32)
    bw = _pad_to(params["blk_w"], (nb_p, H_p, H_p), mxu_dtype)
    bb = _pad_to(params["blk_b"], (nb_p, 1, H_p), f32)
    ln2g = _pad_to(params["ln2_g"], (1, H_p), f32)
    ln2b = _pad_to(params["ln2_b"], (1, H_p), f32)
    w2 = _pad_to(params["w2"], (H_p, Dout_p), mxu_dtype)
    b2 = _pad_to(params["b2"], (1, Dout_p), f32)

    operands = (xp, ln1g, ln1b, w1, b1, blng, blnb, bw, bb, ln2g, ln2b, w2, b2)

    if path == "resident":
        # Single grid axis over batch tiles; weights are grid-invariant -> Buffered(1).
        const2 = lambda shape: _bspec(shape, lambda i: (0, 0), bufs=1)
        const3 = lambda shape: _bspec(shape, lambda i: (0, 0, 0), bufs=1)
        grid_spec = pltpu.PrefetchScalarGridSpec(
            num_scalar_prefetch=0,
            grid=(B_p // bm,),
            in_specs=[
                pl.BlockSpec((bm, Din_p), lambda i: (i, 0)),          # x
                const2((1, Din_p)), const2((1, Din_p)),               # ln1 gamma, beta
                const2((Din_p, H_p)), const2((1, H_p)),               # fc1 W, b
                const3((nb_p, 1, H_p)), const3((nb_p, 1, H_p)),       # block LN gamma, beta
                const3((nb_p, H_p, H_p)), const3((nb_p, 1, H_p)),     # block W, b (resident)
                const2((1, H_p)), const2((1, H_p)),                   # ln2 gamma, beta
                const2((H_p, Dout_p)), const2((1, Dout_p)),           # fc2 W, b
            ],
            out_specs=pl.BlockSpec((bm, Dout_p), lambda i: (i, 0)),
        )
        kernel = functools.partial(
            _resident_kernel, d_in=float(Din), d_h=float(H),
            num_blocks=NB, mxu_dtype=mxu_dtype)
        est = est_resident(bm)
        dims = ("parallel",)
    else:
        # Deepen the streamed block-weight pipeline only when it fits and is useful.
        bw_bufs = 3 if (NB >= 3 and est_stream(bm, 3) <= budget) else 2
        const2 = lambda shape: _bspec(shape, lambda i, j: (0, 0), bufs=1)
        blk3 = lambda shape: _bspec(shape, lambda i, j: (j, 0, 0), bufs=bw_bufs)
        grid_spec = pltpu.PrefetchScalarGridSpec(
            num_scalar_prefetch=0,
            grid=(B_p // bm, NB),
            in_specs=[
                pl.BlockSpec((bm, Din_p), lambda i, j: (i, 0)),       # x
                const2((1, Din_p)), const2((1, Din_p)),               # ln1 gamma, beta
                const2((Din_p, H_p)), const2((1, H_p)),               # fc1 W, b
                blk3((1, 1, H_p)), blk3((1, 1, H_p)),                 # block LN gamma, beta
                blk3((1, H_p, H_p)), blk3((1, 1, H_p)),               # block W, b (streamed)
                const2((1, H_p)), const2((1, H_p)),                   # ln2 gamma, beta
                const2((H_p, Dout_p)), const2((1, Dout_p)),           # fc2 W, b
            ],
            # Output block index only changes with i -> single buffer is enough.
            out_specs=_bspec((bm, Dout_p), lambda i, j: (i, 0), bufs=1),
            scratch_shapes=[pltpu.VMEM((bm, H_p), f32)],
        )
        kernel = functools.partial(
            _stream_kernel, d_in=float(Din), d_h=float(H), mxu_dtype=mxu_dtype)
        est = est_stream(bm, bw_bufs)
        dims = ("parallel", "arbitrary")

    vmem_limit = int(min(budget, max(int(est * 1.25), 16 * 2**20)))

    out_p = pl.pallas_call(
        kernel,
        out_shape=jax.ShapeDtypeStruct((B_p, Dout_p), x.dtype),
        grid_spec=grid_spec,
        compiler_params=pltpu.CompilerParams(
            dimension_semantics=dims,
            vmem_limit_bytes=vmem_limit,
        ),
    )(*operands)
    return out_p[:B, :Dout]


# ----------------------------------------------------------------------------- #
# Synthetic params + pure-JAX reference
# ----------------------------------------------------------------------------- #
def init_params(key, num_blocks, input_dim, hidden_dim, output_dim):
    """Deterministic synthetic parameters with the same shapes as the module."""
    ks = jax.random.split(key, 8)
    s = lambda fan_in: 1.0 / jnp.sqrt(fan_in)
    return {
        "ln1_g": jnp.ones((1, input_dim), jnp.float32),
        "ln1_b": jnp.zeros((1, input_dim), jnp.float32),
        "w1": jax.random.uniform(ks[0], (input_dim, hidden_dim), jnp.float32,
                                 -s(input_dim), s(input_dim)),
        "b1": jax.random.uniform(ks[1], (1, hidden_dim), jnp.float32,
                                 -s(input_dim), s(input_dim)),
        "blk_ln_g": jnp.ones((num_blocks, 1, hidden_dim), jnp.float32),
        "blk_ln_b": jnp.zeros((num_blocks, 1, hidden_dim), jnp.float32),
        "blk_w": jax.random.uniform(ks[2], (num_blocks, hidden_dim, hidden_dim),
                                    jnp.float32, -s(hidden_dim), s(hidden_dim)),
        "blk_b": jax.random.uniform(ks[3], (num_blocks, 1, hidden_dim),
                                    jnp.float32, -s(hidden_dim), s(hidden_dim)),
        "ln2_g": jnp.ones((1, hidden_dim), jnp.float32),
        "ln2_b": jnp.zeros((1, hidden_dim), jnp.float32),
        "w2": jax.random.uniform(ks[4], (hidden_dim, output_dim), jnp.float32,
                                 -s(hidden_dim), s(hidden_dim)),
        "b2": jax.random.uniform(ks[5], (1, output_dim), jnp.float32,
                                 -s(hidden_dim), s(hidden_dim)),
    }


def mlp_resnet_reference(x, params):
    """Pure-JAX reference mirroring the PyTorch forward."""
    def ln(h, g, b):
        mu = jnp.mean(h, axis=-1, keepdims=True)
        var = jnp.mean((h - mu) ** 2, axis=-1, keepdims=True)
        return (h - mu) * jax.lax.rsqrt(var + LN_EPS) * g + b

    silu = lambda h: h * jax.nn.sigmoid(h)

    h = ln(x, params["ln1_g"], params["ln1_b"])
    h = h @ params["w1"] + params["b1"]
    h = silu(h)
    for i in range(params["blk_w"].shape[0]):
        t = ln(h, params["blk_ln_g"][i], params["blk_ln_b"][i])
        t = t @ params["blk_w"][i] + params["blk_b"][i]
        h = silu(t) + h
    h = ln(h, params["ln2_g"], params["ln2_b"])
    return h @ params["w2"] + params["b2"]


if __name__ == "__main__":
    num_blocks, input_dim, hidden_dim, output_dim = 2, 32, 64, 16
    batch = 16

    key = jax.random.PRNGKey(0)
    kx, kp = jax.random.split(key)
    x = jax.random.normal(kx, (batch, input_dim), jnp.float32)
    params = init_params(kp, num_blocks, input_dim, hidden_dim, output_dim)

    ref = mlp_resnet_reference(x, params)

    # Auto path (small model -> resident weights, blocks unrolled in-kernel), bf16 MXU.
    out_fast = jax.block_until_ready(
        mlp_resnet_forward(x, params, mxu_dtype=jnp.bfloat16, path="auto"))
    assert out_fast.shape == (batch, output_dim)
    assert jnp.allclose(out_fast, ref, atol=8e-2, rtol=8e-2), "bf16 resident path mismatch"

    # Forced streaming path (per-block weights on the 'arbitrary' grid axis).
    out_stream = jax.block_until_ready(
        mlp_resnet_forward(x, params, mxu_dtype=jnp.bfloat16, path="stream"))
    assert out_stream.shape == (batch, output_dim)
    assert jnp.allclose(out_stream, ref, atol=8e-2, rtol=8e-2), "bf16 stream path mismatch"

    # f32 MXU path for a tighter numerics check of the fused LN/SiLU/residual math.
    out_f32 = jax.block_until_ready(
        mlp_resnet_forward(x, params, mxu_dtype=jnp.float32, path="auto"))
    assert out_f32.shape == (batch, output_dim)
    assert jnp.allclose(out_f32, ref, atol=2e-2, rtol=2e-2), "f32 path mismatch"

    print("KERNEL_OK")
</pallas_src>

<mosaic_0001>
module attributes {stable_mosaic.version = 11 : i64} {
  func.func @_resident_kernel(%arg0: i32, %arg1: memref<16x128xf32, #tpu.memory_space<vmem>>, %arg2: memref<1x128xf32, #tpu.memory_space<vmem>>, %arg3: memref<1x128xf32, #tpu.memory_space<vmem>>, %arg4: memref<128x128xbf16, #tpu.memory_space<vmem>>, %arg5: memref<1x128xf32, #tpu.memory_space<vmem>>, %arg6: memref<2x1x128xf32, #tpu.memory_space<vmem>>, %arg7: memref<2x1x128xf32, #tpu.memory_space<vmem>>, %arg8: memref<2x128x128xbf16, #tpu.memory_space<vmem>>, %arg9: memref<2x1x128xf32, #tpu.memory_space<vmem>>, %arg10: memref<1x128xf32, #tpu.memory_space<vmem>>, %arg11: memref<1x128xf32, #tpu.memory_space<vmem>>, %arg12: memref<128x128xbf16, #tpu.memory_space<vmem>>, %arg13: memref<1x128xf32, #tpu.memory_space<vmem>>, %arg14: memref<16x128xf32, #tpu.memory_space<vmem>>) attributes {dimension_semantics = [#tpu.dimension_semantics<parallel>], iteration_bounds = array<i64: 1>, scalar_prefetch = 0 : i64, scratch_operands = 0 : i64, tpu.core_type = #tpu.core_type<tc>, window_params = [{transform_indices = @transform_0, window_bounds = array<i64: 16, 128>}, {pipeline_mode = #tpu.pipeline_mode<synchronous>, transform_indices = @transform_1, window_bounds = array<i64: 1, 128>}, {pipeline_mode = #tpu.pipeline_mode<synchronous>, transform_indices = @transform_2, window_bounds = array<i64: 1, 128>}, {pipeline_mode = #tpu.pipeline_mode<synchronous>, transform_indices = @transform_3, window_bounds = array<i64: 128, 128>}, {pipeline_mode = #tpu.pipeline_mode<synchronous>, transform_indices = @transform_4, window_bounds = array<i64: 1, 128>}, {pipeline_mode = #tpu.pipeline_mode<synchronous>, transform_indices = @transform_5, window_bounds = array<i64: 2, 1, 128>}, {pipeline_mode = #tpu.pipeline_mode<synchronous>, transform_indices = @transform_6, window_bounds = array<i64: 2, 1, 128>}, {pipeline_mode = #tpu.pipeline_mode<synchronous>, transform_indices = @transform_7, window_bounds = array<i64: 2, 128, 128>}, {pipeline_mode = #tpu.pipeline_mode<synchronous>, transform_indices = @transform_8, window_bounds = array<i64: 2, 1, 128>}, {pipeline_mode = #tpu.pipeline_mode<synchronous>, transform_indices = @transform_9, window_bounds = array<i64: 1, 128>}, {pipeline_mode = #tpu.pipeline_mode<synchronous>, transform_indices = @transform_10, window_bounds = array<i64: 1, 128>}, {pipeline_mode = #tpu.pipeline_mode<synchronous>, transform_indices = @transform_11, window_bounds = array<i64: 128, 128>}, {pipeline_mode = #tpu.pipeline_mode<synchronous>, transform_indices = @transform_12, window_bounds = array<i64: 1, 128>}, {transform_indices = @transform_13, window_bounds = array<i64: 16, 128>}]} {
    %c0 = arith.constant 0 : index
    %c0_0 = arith.constant 0 : index
    %0 = vector.load %arg1[%c0, %c0_0] : memref<16x128xf32, #tpu.memory_space<vmem>>, vector<16x128xf32>
    %c0_1 = arith.constant 0 : index
    %c0_2 = arith.constant 0 : index
    %1 = vector.load %arg2[%c0_1, %c0_2] : memref<1x128xf32, #tpu.memory_space<vmem>>, vector<1x128xf32>
    %c0_3 = arith.constant 0 : index
    %c0_4 = arith.constant 0 : index
    %2 = vector.load %arg3[%c0_3, %c0_4] : memref<1x128xf32, #tpu.memory_space<vmem>>, vector<1x128xf32>
    %cst = arith.constant dense<0.000000e+00> : vector<16xf32>
    %3 = vector.multi_reduction <add>, %0, %cst [1] : vector<16x128xf32> to vector<16xf32>
    %4 = vector.shape_cast %3 : vector<16xf32> to vector<16x1xf32>
    %cst_5 = arith.constant 3.125000e-02 : f32
    %5 = vector.broadcast %cst_5 : f32 to vector<16x1xf32>
    %6 = arith.mulf %4, %5 : vector<16x1xf32>
    %7 = vector.broadcast %6 : vector<16x1xf32> to vector<16x128xf32>
    %8 = arith.subf %0, %7 : vector<16x128xf32>
    %9 = arith.mulf %8, %8 : vector<16x128xf32>
    %cst_6 = arith.constant dense<0.000000e+00> : vector<16xf32>
    %10 = vector.multi_reduction <add>, %9, %cst_6 [1] : vector<16x128xf32> to vector<16xf32>
    %11 = vector.shape_cast %10 : vector<16xf32> to vector<16x1xf32>
    %12 = arith.mulf %6, %6 : vector<16x1xf32>
    %cst_7 = arith.constant 9.600000e+01 : f32
    %13 = vector.broadcast %cst_7 : f32 to vector<16x1xf32>
    %14 = arith.mulf %13, %12 : vector<16x1xf32>
    %15 = arith.subf %11, %14 : vector<16x1xf32>
    %cst_8 = arith.constant 3.125000e-02 : f32
    %16 = vector.broadcast %cst_8 : f32 to vector<16x1xf32>
    %17 = arith.mulf %15, %16 : vector<16x1xf32>
    %cst_9 = arith.constant 0.000000e+00 : f32
    %18 = vector.broadcast %cst_9 : f32 to vector<16x1xf32>
    %19 = arith.maximumf %17, %18 : vector<16x1xf32>
    %cst_10 = arith.constant 9.99999974E-6 : f32
    %20 = vector.broadcast %cst_10 : f32 to vector<16x1xf32>
    %21 = arith.addf %19, %20 : vector<16x1xf32>
    %22 = math.rsqrt %21 : vector<16x1xf32>
    %23 = vector.broadcast %22 : vector<16x1xf32> to vector<16x128xf32>
    %24 = arith.mulf %8, %23 : vector<16x128xf32>
    %25 = vector.broadcast %1 : vector<1x128xf32> to vector<16x128xf32>
    %26 = arith.mulf %24, %25 : vector<16x128xf32>
    %27 = vector.broadcast %2 : vector<1x128xf32> to vector<16x128xf32>
    %28 = arith.addf %26, %27 : vector<16x128xf32>
    %29 = arith.truncf %28 : vector<16x128xf32> to vector<16x128xbf16>
    %c0_11 = arith.constant 0 : index
    %c0_12 = arith.constant 0 : index
    %30 = vector.load %arg4[%c0_11, %c0_12] : memref<128x128xbf16, #tpu.memory_space<vmem>>, vector<128x128xbf16>
    %cst_13 = arith.constant dense<0.000000e+00> : vector<16x128xf32>
    %31 = tpu.matmul %29, %30, %cst_13 {dimension_numbers = #tpu.dot_dimension_numbers<[1], [0], [0], [1], [0, 0, 1, 1], [], []>} : vector<16x128xbf16>, vector<128x128xbf16>, vector<16x128xf32> -> vector<16x128xf32>
    %c0_14 = arith.constant 0 : index
    %c0_15 = arith.constant 0 : index
    %32 = vector.load %arg5[%c0_14, %c0_15] : memref<1x128xf32, #tpu.memory_space<vmem>>, vector<1x128xf32>
    %33 = vector.broadcast %32 : vector<1x128xf32> to vector<16x128xf32>
    %34 = arith.addf %31, %33 : vector<16x128xf32>
    %35 = arith.negf %34 : vector<16x128xf32>
    %36 = math.exp %35 : vector<16x128xf32>
    %cst_16 = arith.constant 1.000000e+00 : f32
    %37 = vector.broadcast %cst_16 : f32 to vector<16x128xf32>
    %38 = arith.addf %37, %36 : vector<16x128xf32>
    %39 = arith.divf %37, %38 : vector<16x128xf32>
    %40 = arith.mulf %34, %39 : vector<16x128xf32>
    %c0_i32 = arith.constant 0 : i32
    %41 = arith.index_cast %c0_i32 : i32 to index
    %c0_17 = arith.constant 0 : index
    %c0_18 = arith.constant 0 : index
    %42 = vector.load %arg6[%41, %c0_17, %c0_18] : memref<2x1x128xf32, #tpu.memory_space<vmem>>, vector<1x1x128xf32>
    %43 = vector.shape_cast %42 : vector<1x1x128xf32> to vector<1x128xf32>
    %44 = arith.index_cast %c0_i32 : i32 to index
    %c0_19 = arith.constant 0 : index
    %c0_20 = arith.constant 0 : index
    %45 = vector.load %arg7[%44, %c0_19, %c0_20] : memref<2x1x128xf32, #tpu.memory_space<vmem>>, vector<1x1x128xf32>
    %46 = vector.shape_cast %45 : vector<1x1x128xf32> to vector<1x128xf32>
    %cst_21 = arith.constant dense<0.000000e+00> : vector<16xf32>
    %47 = vector.multi_reduction <add>, %40, %cst_21 [1] : vector<16x128xf32> to vector<16xf32>
    %48 = vector.shape_cast %47 : vector<16xf32> to vector<16x1xf32>
    %cst_22 = arith.constant 1.562500e-02 : f32
    %49 = vector.broadcast %cst_22 : f32 to vector<16x1xf32>
    %50 = arith.mulf %48, %49 : vector<16x1xf32>
    %51 = vector.broadcast %50 : vector<16x1xf32> to vector<16x128xf32>
    %52 = arith.subf %40, %51 : vector<16x128xf32>
    %53 = arith.mulf %52, %52 : vector<16x128xf32>
    %cst_23 = arith.constant dense<0.000000e+00> : vector<16xf32>
    %54 = vector.multi_reduction <add>, %53, %cst_23 [1] : vector<16x128xf32> to vector<16xf32>
    %55 = vector.shape_cast %54 : vector<16xf32> to vector<16x1xf32>
    %56 = arith.mulf %50, %50 : vector<16x1xf32>
    %cst_24 = arith.constant 6.400000e+01 : f32
    %57 = vector.broadcast %cst_24 : f32 to vector<16x1xf32>
    %58 = arith.mulf %57, %56 : vector<16x1xf32>
    %59 = arith.subf %55, %58 : vector<16x1xf32>
    %cst_25 = arith.constant 1.562500e-02 : f32
    %60 = vector.broadcast %cst_25 : f32 to vector<16x1xf32>
    %61 = arith.mulf %59, %60 : vector<16x1xf32>
    %cst_26 = arith.constant 0.000000e+00 : f32
    %62 = vector.broadcast %cst_26 : f32 to vector<16x1xf32>
    %63 = arith.maximumf %61, %62 : vector<16x1xf32>
    %cst_27 = arith.constant 9.99999974E-6 : f32
    %64 = vector.broadcast %cst_27 : f32 to vector<16x1xf32>
    %65 = arith.addf %63, %64 : vector<16x1xf32>
    %66 = math.rsqrt %65 : vector<16x1xf32>
    %67 = vector.broadcast %66 : vector<16x1xf32> to vector<16x128xf32>
    %68 = arith.mulf %52, %67 : vector<16x128xf32>
    %69 = vector.broadcast %43 : vector<1x128xf32> to vector<16x128xf32>
    %70 = arith.mulf %68, %69 : vector<16x128xf32>
    %71 = vector.broadcast %46 : vector<1x128xf32> to vector<16x128xf32>
    %72 = arith.addf %70, %71 : vector<16x128xf32>
    %73 = arith.truncf %72 : vector<16x128xf32> to vector<16x128xbf16>
    %74 = arith.index_cast %c0_i32 : i32 to index
    %c0_28 = arith.constant 0 : index
    %c0_29 = arith.constant 0 : index
    %75 = vector.load %arg8[%74, %c0_28, %c0_29] : memref<2x128x128xbf16, #tpu.memory_space<vmem>>, vector<1x128x128xbf16>
    %76 = vector.shape_cast %75 : vector<1x128x128xbf16> to vector<128x128xbf16>
    %cst_30 = arith.constant dense<0.000000e+00> : vector<16x128xf32>
    %77 = tpu.matmul %73, %76, %cst_30 {dimension_numbers = #tpu.dot_dimension_numbers<[1], [0], [0], [1], [0, 0, 1, 1], [], []>} : vector<16x128xbf16>, vector<128x128xbf16>, vector<16x128xf32> -> vector<16x128xf32>
    %78 = arith.index_cast %c0_i32 : i32 to index
    %c0_31 = arith.constant 0 : index
    %c0_32 = arith.constant 0 : index
    %79 = vector.load %arg9[%78, %c0_31, %c0_32] : memref<2x1x128xf32, #tpu.memory_space<vmem>>, vector<1x1x128xf32>
    %80 = vector.shape_cast %79 : vector<1x1x128xf32> to vector<1x128xf32>
    %81 = vector.broadcast %80 : vector<1x128xf32> to vector<16x128xf32>
    %82 = arith.addf %77, %81 : vector<16x128xf32>
    %83 = arith.negf %82 : vector<16x128xf32>
    %84 = math.exp %83 : vector<16x128xf32>
    %cst_33 = arith.constant 1.000000e+00 : f32
    %85 = vector.broadcast %cst_33 : f32 to vector<16x128xf32>
    %86 = arith.addf %85, %84 : vector<16x128xf32>
    %87 = arith.divf %85, %86 : vector<16x128xf32>
    %88 = arith.mulf %82, %87 : vector<16x128xf32>
    %89 = arith.addf %88, %40 : vector<16x128xf32>
    %c1_i32 = arith.constant 1 : i32
    %90 = arith.index_cast %c1_i32 : i32 to index
    %c0_34 = arith.constant 0 : index
    %c0_35 = arith.constant 0 : index
    %91 = vector.load %arg6[%90, %c0_34, %c0_35] : memref<2x1x128xf32, #tpu.memory_space<vmem>>, vector<1x1x128xf32>
    %92 = vector.shape_cast %91 : vector<1x1x128xf32> to vector<1x128xf32>
    %93 = arith.index_cast %c1_i32 : i32 to index
    %c0_36 = arith.constant 0 : index
    %c0_37 = arith.constant 0 : index
    %94 = vector.load %arg7[%93, %c0_36, %c0_37] : memref<2x1x128xf32, #tpu.memory_space<vmem>>, vector<1x1x128xf32>
    %95 = vector.shape_cast %94 : vector<1x1x128xf32> to vector<1x128xf32>
    %cst_38 = arith.constant dense<0.000000e+00> : vector<16xf32>
    %96 = vector.multi_reduction <add>, %89, %cst_38 [1] : vector<16x128xf32> to vector<16xf32>
    %97 = vector.shape_cast %96 : vector<16xf32> to vector<16x1xf32>
    %cst_39 = arith.constant 1.562500e-02 : f32
    %98 = vector.broadcast %cst_39 : f32 to vector<16x1xf32>
    %99 = arith.mulf %97, %98 : vector<16x1xf32>
    %100 = vector.broadcast %99 : vector<16x1xf32> to vector<16x128xf32>
    %101 = arith.subf %89, %100 : vector<16x128xf32>
    %102 = arith.mulf %101, %101 : vector<16x128xf32>
    %cst_40 = arith.constant dense<0.000000e+00> : vector<16xf32>
    %103 = vector.multi_reduction <add>, %102, %cst_40 [1] : vector<16x128xf32> to vector<16xf32>
    %104 = vector.shape_cast %103 : vector<16xf32> to vector<16x1xf32>
    %105 = arith.mulf %99, %99 : vector<16x1xf32>
    %cst_41 = arith.constant 6.400000e+01 : f32
    %106 = vector.broadcast %cst_41 : f32 to vector<16x1xf32>
    %107 = arith.mulf %106, %105 : vector<16x1xf32>
    %108 = arith.subf %104, %107 : vector<16x1xf32>
    %cst_42 = arith.constant 1.562500e-02 : f32
    %109 = vector.broadcast %cst_42 : f32 to vector<16x1xf32>
    %110 = arith.mulf %108, %109 : vector<16x1xf32>
    %cst_43 = arith.constant 0.000000e+00 : f32
    %111 = vector.broadcast %cst_43 : f32 to vector<16x1xf32>
    %112 = arith.maximumf %110, %111 : vector<16x1xf32>
    %cst_44 = arith.constant 9.99999974E-6 : f32
    %113 = vector.broadcast %cst_44 : f32 to vector<16x1xf32>
    %114 = arith.addf %112, %113 : vector<16x1xf32>
    %115 = math.rsqrt %114 : vector<16x1xf32>
    %116 = vector.broadcast %115 : vector<16x1xf32> to vector<16x128xf32>
    %117 = arith.mulf %101, %116 : vector<16x128xf32>
    %118 = vector.broadcast %92 : vector<1x128xf32> to vector<16x128xf32>
    %119 = arith.mulf %117, %118 : vector<16x128xf32>
    %120 = vector.broadcast %95 : vector<1x128xf32> to vector<16x128xf32>
    %121 = arith.addf %119, %120 : vector<16x128xf32>
    %122 = arith.truncf %121 : vector<16x128xf32> to vector<16x128xbf16>
    %123 = arith.index_cast %c1_i32 : i32 to index
    %c0_45 = arith.constant 0 : index
    %c0_46 = arith.constant 0 : index
    %124 = vector.load %arg8[%123, %c0_45, %c0_46] : memref<2x128x128xbf16, #tpu.memory_space<vmem>>, vector<1x128x128xbf16>
    %125 = vector.shape_cast %124 : vector<1x128x128xbf16> to vector<128x128xbf16>
    %cst_47 = arith.constant dense<0.000000e+00> : vector<16x128xf32>
    %126 = tpu.matmul %122, %125, %cst_47 {dimension_numbers = #tpu.dot_dimension_numbers<[1], [0], [0], [1], [0, 0, 1, 1], [], []>} : vector<16x128xbf16>, vector<128x128xbf16>, vector<16x128xf32> -> vector<16x128xf32>
    %127 = arith.index_cast %c1_i32 : i32 to index
    %c0_48 = arith.constant 0 : index
    %c0_49 = arith.constant 0 : index
    %128 = vector.load %arg9[%127, %c0_48, %c0_49] : memref<2x1x128xf32, #tpu.memory_space<vmem>>, vector<1x1x128xf32>
    %129 = vector.shape_cast %128 : vector<1x1x128xf32> to vector<1x128xf32>
    %130 = vector.broadcast %129 : vector<1x128xf32> to vector<16x128xf32>
    %131 = arith.addf %126, %130 : vector<16x128xf32>
    %132 = arith.negf %131 : vector<16x128xf32>
    %133 = math.exp %132 : vector<16x128xf32>
    %cst_50 = arith.constant 1.000000e+00 : f32
    %134 = vector.broadcast %cst_50 : f32 to vector<16x128xf32>
    %135 = arith.addf %134, %133 : vector<16x128xf32>
    %136 = arith.divf %134, %135 : vector<16x128xf32>
    %137 = arith.mulf %131, %136 : vector<16x128xf32>
    %138 = arith.addf %137, %89 : vector<16x128xf32>
    %c2_i32 = arith.constant 2 : i32
    %c0_51 = arith.constant 0 : index
    %c0_52 = arith.constant 0 : index
    %139 = vector.load %arg10[%c0_51, %c0_52] : memref<1x128xf32, #tpu.memory_space<vmem>>, vector<1x128xf32>
    %c0_53 = arith.constant 0 : index
    %c0_54 = arith.constant 0 : index
    %140 = vector.load %arg11[%c0_53, %c0_54] : memref<1x128xf32, #tpu.memory_space<vmem>>, vector<1x128xf32>
    %cst_55 = arith.constant dense<0.000000e+00> : vector<16xf32>
    %141 = vector.multi_reduction <add>, %138, %cst_55 [1] : vector<16x128xf32> to vector<16xf32>
    %142 = vector.shape_cast %141 : vector<16xf32> to vector<16x1xf32>
    %cst_56 = arith.constant 1.562500e-02 : f32
    %143 = vector.broadcast %cst_56 : f32 to vector<16x1xf32>
    %144 = arith.mulf %142, %143 : vector<16x1xf32>
    %145 = vector.broadcast %144 : vector<16x1xf32> to vector<16x128xf32>
    %146 = arith.subf %138, %145 : vector<16x128xf32>
    %147 = arith.mulf %146, %146 : vector<16x128xf32>
    %cst_57 = arith.constant dense<0.000000e+00> : vector<16xf32>
    %148 = vector.multi_reduction <add>, %147, %cst_57 [1] : vector<16x128xf32> to vector<16xf32>
    %149 = vector.shape_cast %148 : vector<16xf32> to vector<16x1xf32>
    %150 = arith.mulf %144, %144 : vector<16x1xf32>
    %cst_58 = arith.constant 6.400000e+01 : f32
    %151 = vector.broadcast %cst_58 : f32 to vector<16x1xf32>
    %152 = arith.mulf %151, %150 : vector<16x1xf32>
    %153 = arith.subf %149, %152 : vector<16x1xf32>
    %cst_59 = arith.constant 1.562500e-02 : f32
    %154 = vector.broadcast %cst_59 : f32 to vector<16x1xf32>
    %155 = arith.mulf %153, %154 : vector<16x1xf32>
    %cst_60 = arith.constant 0.000000e+00 : f32
    %156 = vector.broadcast %cst_60 : f32 to vector<16x1xf32>
    %157 = arith.maximumf %155, %156 : vector<16x1xf32>
    %cst_61 = arith.constant 9.99999974E-6 : f32
    %158 = vector.broadcast %cst_61 : f32 to vector<16x1xf32>
    %159 = arith.addf %157, %158 : vector<16x1xf32>
    %160 = math.rsqrt %159 : vector<16x1xf32>
    %161 = vector.broadcast %160 : vector<16x1xf32> to vector<16x128xf32>
    %162 = arith.mulf %146, %161 : vector<16x128xf32>
    %163 = vector.broadcast %139 : vector<1x128xf32> to vector<16x128xf32>
    %164 = arith.mulf %162, %163 : vector<16x128xf32>
    %165 = vector.broadcast %140 : vector<1x128xf32> to vector<16x128xf32>
    %166 = arith.addf %164, %165 : vector<16x128xf32>
    %167 = arith.truncf %166 : vector<16x128xf32> to vector<16x128xbf16>
    %c0_62 = arith.constant 0 : index
    %c0_63 = arith.constant 0 : index
    %168 = vector.load %arg12[%c0_62, %c0_63] : memref<128x128xbf16, #tpu.memory_space<vmem>>, vector<128x128xbf16>
    %cst_64 = arith.constant dense<0.000000e+00> : vector<16x128xf32>
    %169 = tpu.matmul %167, %168, %cst_64 {dimension_numbers = #tpu.dot_dimension_numbers<[1], [0], [0], [1], [0, 0, 1, 1], [], []>} : vector<16x128xbf16>, vector<128x128xbf16>, vector<16x128xf32> -> vector<16x128xf32>
    %c0_65 = arith.constant 0 : index
    %c0_66 = arith.constant 0 : index
    %170 = vector.load %arg13[%c0_65, %c0_66] : memref<1x128xf32, #tpu.memory_space<vmem>>, vector<1x128xf32>
    %171 = vector.broadcast %170 : vector<1x128xf32> to vector<16x128xf32>
    %172 = arith.addf %169, %171 : vector<16x128xf32>
    %c0_67 = arith.constant 0 : index
    %c0_68 = arith.constant 0 : index
    %173 = vector.load %arg14[%c0_67, %c0_68] : memref<16x128xf32, #tpu.memory_space<vmem>>, vector<16x128xf32>
    tpu.vector_store %arg14[%c0_67, %c0_68], %172 {strides = array<i32>} : memref<16x128xf32, #tpu.memory_space<vmem>>, vector<16x128xf32>,
    return
  }
  func.func @transform_0(%arg0: i32) -> (i32, i32) {
    %c0_i32 = arith.constant 0 : i32
    %c0_i32_0 = arith.constant 0 : i32
    return %arg0, %c0_i32 : i32, i32
  }
  func.func @transform_1(%arg0: i32) -> (i32, i32) {
    %c0_i32 = arith.constant 0 : i32
    %c0_i32_0 = arith.constant 0 : i32
    %c0_i32_1 = arith.constant 0 : i32
    return %c0_i32, %c0_i32_0 : i32, i32
  }
  func.func @transform_2(%arg0: i32) -> (i32, i32) {
    %c0_i32 = arith.constant 0 : i32
    %c0_i32_0 = arith.constant 0 : i32
    %c0_i32_1 = arith.constant 0 : i32
    return %c0_i32, %c0_i32_0 : i32, i32
  }
  func.func @transform_3(%arg0: i32) -> (i32, i32) {
    %c0_i32 = arith.constant 0 : i32
    %c0_i32_0 = arith.constant 0 : i32
    %c0_i32_1 = arith.constant 0 : i32
    return %c0_i32, %c0_i32_0 : i32, i32
  }
  func.func @transform_4(%arg0: i32) -> (i32, i32) {
    %c0_i32 = arith.constant 0 : i32
    %c0_i32_0 = arith.constant 0 : i32
    %c0_i32_1 = arith.constant 0 : i32
    return %c0_i32, %c0_i32_0 : i32, i32
  }
  func.func @transform_5(%arg0: i32) -> (i32, i32, i32) {
    %c0_i32 = arith.constant 0 : i32
    %c0_i32_0 = arith.constant 0 : i32
    %c0_i32_1 = arith.constant 0 : i32
    %c0_i32_2 = arith.constant 0 : i32
    return %c0_i32, %c0_i32_0, %c0_i32_1 : i32, i32, i32
  }
  func.func @transform_6(%arg0: i32) -> (i32, i32, i32) {
    %c0_i32 = arith.constant 0 : i32
    %c0_i32_0 = arith.constant 0 : i32
    %c0_i32_1 = arith.constant 0 : i32
    %c0_i32_2 = arith.constant 0 : i32
    return %c0_i32, %c0_i32_0, %c0_i32_1 : i32, i32, i32
  }
  func.func @transform_7(%arg0: i32) -> (i32, i32, i32) {
    %c0_i32 = arith.constant 0 : i32
    %c0_i32_0 = arith.constant 0 : i32
    %c0_i32_1 = arith.constant 0 : i32
    %c0_i32_2 = arith.constant 0 : i32
    return %c0_i32, %c0_i32_0, %c0_i32_1 : i32, i32, i32
  }
  func.func @transform_8(%arg0: i32) -> (i32, i32, i32) {
    %c0_i32 = arith.constant 0 : i32
    %c0_i32_0 = arith.constant 0 : i32
    %c0_i32_1 = arith.constant 0 : i32
    %c0_i32_2 = arith.constant 0 : i32
    return %c0_i32, %c0_i32_0, %c0_i32_1 : i32, i32, i32
  }
  func.func @transform_9(%arg0: i32) -> (i32, i32) {
    %c0_i32 = arith.constant 0 : i32
    %c0_i32_0 = arith.constant 0 : i32
    %c0_i32_1 = arith.constant 0 : i32
    return %c0_i32, %c0_i32_0 : i32, i32
  }
  func.func @transform_10(%arg0: i32) -> (i32, i32) {
    %c0_i32 = arith.constant 0 : i32
    %c0_i32_0 = arith.constant 0 : i32
    %c0_i32_1 = arith.constant 0 : i32
    return %c0_i32, %c0_i32_0 : i32, i32
  }
  func.func @transform_11(%arg0: i32) -> (i32, i32) {
    %c0_i32 = arith.constant 0 : i32
    %c0_i32_0 = arith.constant 0 : i32
    %c0_i32_1 = arith.constant 0 : i32
    return %c0_i32, %c0_i32_0 : i32, i32
  }
  func.func @transform_12(%arg0: i32) -> (i32, i32) {
    %c0_i32 = arith.constant 0 : i32
    %c0_i32_0 = arith.constant 0 : i32
    %c0_i32_1 = arith.constant 0 : i32
    return %c0_i32, %c0_i32_0 : i32, i32
  }
  func.func @transform_13(%arg0: i32) -> (i32, i32) {
    %c0_i32 = arith.constant 0 : i32
    %c0_i32_0 = arith.constant 0 : i32
    return %arg0, %c0_i32 : i32, i32
  }
}

</mosaic_0001>

<llo_original>
// kernel: tpu_custom_call.1
$region0: #{tpu_custom_call.1}
  #allocation0 [shape = 'u32[]', space=smem, size = 0x4, offset = 0x4, fixed_abs, tag = 'smem constant byte address 0x4 - core index']
  #allocation1 [shape = 'u32[144,128]{1,0:T(1,128)}', space=vmem, size = 0x12000, scoped, tag = 'internal scratch']
  %s0 = inlined_call_operand.hbm [shape: f32[16,128], index: 0, kind: input, shape index: {}]
  %s1 = inlined_call_operand.vmem [shape: f32[1,128], index: 1, kind: input, shape index: {}]
  %s2 = inlined_call_operand.hbm [shape: f32[1,128], index: 2, kind: input, shape index: {}]
  %s3 = inlined_call_operand.hbm [shape: bf16[128,128], index: 3, kind: input, shape index: {}]
  %s4 = inlined_call_operand.hbm [shape: f32[1,128], index: 4, kind: input, shape index: {}]
  %s5 = inlined_call_operand.vmem [shape: f32[2,1,128], index: 5, kind: input, shape index: {}]
  %s6 = inlined_call_operand.vmem [shape: f32[2,1,128], index: 6, kind: input, shape index: {}]
  %s7 = inlined_call_operand.hbm [shape: bf16[2,128,128], index: 7, kind: input, shape index: {}]
  %s8 = inlined_call_operand.vmem [shape: f32[2,1,128], index: 8, kind: input, shape index: {}]
  %s9 = inlined_call_operand.vmem [shape: f32[1,128], index: 9, kind: input, shape index: {}]
  %s10 = inlined_call_operand.vmem [shape: f32[1,128], index: 10, kind: input, shape index: {}]
  %s11 = inlined_call_operand.hbm [shape: bf16[128,128], index: 11, kind: input, shape index: {}]
  %s12 = inlined_call_operand.vmem [shape: f32[1,128], index: 12, kind: input, shape index: {}]
  %s13 = inlined_call_operand.hbm [shape: f32[16,128], index: 13, kind: output, shape index: {}]
  %s14 = sld [smem:[#allocation0]]
  $region86: #{tpu_custom_call.1} parent=0
    _
  %s16 = ssub.s32 1, %s14
  %s17 = scalar_select 0, %s16, %s14
  $region1: #{tpu_custom_call.1} parent=0
    #allocation2 [shape = 'u8[8192]{0}', space=vmem, size = 0x2000, scoped, tag = 'input window, operand 0, single buffered']
    #allocation3 [shape = 's32[1]{0}', space=sflag, size = 0x4, scoped, tag = 'scoped memory for tpu_custom_call.1']
    #allocation4 [shape = 's32[1]{0}', space=sflag, size = 0x4, scoped, tag = 'scoped memory for tpu_custom_call.1']
    #allocation5 [shape = 'u8[512]{0}', space=vmem, size = 0x400, scoped, tag = 'input window, operand 2, single buffered']
    #allocation6 [shape = 's32[1]{0}', space=sflag, size = 0x4, scoped, tag = 'scoped memory for tpu_custom_call.1']
    #allocation7 [shape = 'u8[32768]{0}', space=vmem, size = 0x8000, scoped, tag = 'input window, operand 3, single buffered']
    #allocation8 [shape = 'u8[512]{0}', space=vmem, size = 0x400, scoped, tag = 'input window, operand 4, single buffered']
    #allocation9 [shape = 's32[1]{0}', space=sflag, size = 0x4, scoped, tag = 'scoped memory for tpu_custom_call.1']
    #allocation10 [shape = 'u8[65536]{0}', space=vmem, size = 0x10000, scoped, tag = 'input window, operand 7, single buffered']
    #allocation11 [shape = 'u8[32768]{0}', space=vmem, size = 0x8000, scoped, tag = 'input window, operand 11, single buffered']
    #allocation12 [shape = 's32[1]{0}', space=sflag, size = 0x4, scoped, tag = 'scoped memory for tpu_custom_call.1']
    #allocation13 [shape = 'u8[8192]{0}', space=vmem, size = 0x2000, scoped, tag = 'output window, operand 0, single buffered']
    %18 = vsyncpa [#allocation3], 0
    %19 = vsyncpa [#allocation6], 0
    %20 = vsyncpa [#allocation9], 0
    %21 = vsyncpa [#allocation12], 0
    %22 = vsyncpa [#allocation4], 0
    // Predicated region
    $region2: #{tpu_custom_call.1} parent=1 // pred_check
      _
    $region3: #{tpu_custom_call.1} parent=1 // pred_check_branch
      %24 = sbr.rel (0) target = $region5
    $region4: #{tpu_custom_call.1} parent=1 // pred_region
      %s26 = ssub.s32 256, 256
      %27 = vsyncadd [#allocation3], %s26
      %s28 = sshll.u32 [#allocation2], 4
      %s29 = int_to_ptr.vmem [resolvable:$true] %s28
      %34 = dma.hbm_to_vmem [thread:$0]  %s0, 256, %s29, [#allocation3], 128, 128, 8
    $region5: #{tpu_custom_call.1} parent=1 // pred_fallthru
      _
    // Predicated region
    $region6: #{tpu_custom_call.1} parent=1 // pred_check
      _
    $region7: #{tpu_custom_call.1} parent=1 // pred_check_branch
      %36 = sbr.rel (0) target = $region9
    $region8: #{tpu_custom_call.1} parent=1 // pred_region
      _
    $region9: #{tpu_custom_call.1} parent=1 // pred_fallthru
      _
    // Predicated region
    $region10: #{tpu_custom_call.1} parent=1 // pred_check
      _
    $region11: #{tpu_custom_call.1} parent=1 // pred_check_branch
      %38 = sbr.rel (0) target = $region13
    $region12: #{tpu_custom_call.1} parent=1 // pred_region
      %s40 = ssub.s32 16, 16
      %41 = vsyncadd [#allocation6], %s40
      %s43 = sshll.u32 [#allocation5], 4
      %s44 = int_to_ptr.vmem [resolvable:$true] %s43
      %46 = dma.hbm_to_vmem [thread:$0]  %s2, 16, %s44, [#allocation6]
    $region13: #{tpu_custom_call.1} parent=1 // pred_fallthru
      _
    // Predicated region
    $region14: #{tpu_custom_call.1} parent=1 // pred_check
      _
    $region15: #{tpu_custom_call.1} parent=1 // pred_check_branch
      %48 = sbr.rel (0) target = $region17
    $region16: #{tpu_custom_call.1} parent=1 // pred_region
      %s50 = ssub.s32 1024, 1024
      %51 = vsyncadd [#allocation6], %s50
      %s52 = sshll.u32 [#allocation7], 4
      %s53 = int_to_ptr.vmem [resolvable:$true] %s52
      %58 = dma.hbm_to_vmem [thread:$0]  %s3, 1024, %s53, [#allocation6], 64, 64, 4
    $region17: #{tpu_custom_call.1} parent=1 // pred_fallthru
      _
    // Predicated region
    $region18: #{tpu_custom_call.1} parent=1 // pred_check
      _
    $region19: #{tpu_custom_call.1} parent=1 // pred_check_branch
      %60 = sbr.rel (0) target = $region21
    $region20: #{tpu_custom_call.1} parent=1 // pred_region
      %s62 = ssub.s32 16, 16
      %63 = vsyncadd [#allocation9], %s62
      %s65 = sshll.u32 [#allocation8], 4
      %s66 = int_to_ptr.vmem [resolvable:$true] %s65
      %68 = dma.hbm_to_vmem [thread:$0]  %s4, 16, %s66, [#allocation9]
    $region21: #{tpu_custom_call.1} parent=1 // pred_fallthru
      _
    // Predicated region
    $region22: #{tpu_custom_call.1} parent=1 // pred_check
      _
    $region23: #{tpu_custom_call.1} parent=1 // pred_check_branch
      %70 = sbr.rel (0) target = $region25
    $region24: #{tpu_custom_call.1} parent=1 // pred_region
      _
    $region25: #{tpu_custom_call.1} parent=1 // pred_fallthru
      _
    // Predicated region
    $region26: #{tpu_custom_call.1} parent=1 // pred_check
      _
    $region27: #{tpu_custom_call.1} parent=1 // pred_check_branch
      %72 = sbr.rel (0) target = $region29
    $region28: #{tpu_custom_call.1} parent=1 // pred_region
      _
    $region29: #{tpu_custom_call.1} parent=1 // pred_fallthru
      _
    // Predicated region
    $region30: #{tpu_custom_call.1} parent=1 // pred_check
      _
    $region31: #{tpu_custom_call.1} parent=1 // pred_check_branch
      %74 = sbr.rel (0) target = $region33
    $region32: #{tpu_custom_call.1} parent=1 // pred_region
      %s76 = ssub.s32 2048, 2048
      %77 = vsyncadd [#allocation9], %s76
      %s78 = sshll.u32 [#allocation10], 4
      %s79 = int_to_ptr.vmem [resolvable:$true] %s78
      %84 = dma.hbm_to_vmem [thread:$0]  %s7, 2048, %s79, [#allocation9], 64, 64, 4
    $region33: #{tpu_custom_call.1} parent=1 // pred_fallthru
      _
    // Predicated region
    $region34: #{tpu_custom_call.1} parent=1 // pred_check
      _
    $region35: #{tpu_custom_call.1} parent=1 // pred_check_branch
      %86 = sbr.rel (0) target = $region37
    $region36: #{tpu_custom_call.1} parent=1 // pred_region
      _
    $region37: #{tpu_custom_call.1} parent=1 // pred_fallthru
      _
    // Predicated region
    $region38: #{tpu_custom_call.1} parent=1 // pred_check
      _
    $region39: #{tpu_custom_call.1} parent=1 // pred_check_branch
      %88 = sbr.rel (0) target = $region41
    $region40: #{tpu_custom_call.1} parent=1 // pred_region
      _
    $region41: #{tpu_custom_call.1} parent=1 // pred_fallthru
      _
    // Predicated region
    $region42: #{tpu_custom_call.1} parent=1 // pred_check
      _
    $region43: #{tpu_custom_call.1} parent=1 // pred_check_branch
      %90 = sbr.rel (0) target = $region45
    $region44: #{tpu_custom_call.1} parent=1 // pred_region
      _
    $region45: #{tpu_custom_call.1} parent=1 // pred_fallthru
      _
    // Predicated region
    $region46: #{tpu_custom_call.1} parent=1 // pred_check
      _
    $region47: #{tpu_custom_call.1} parent=1 // pred_check_branch
      %92 = sbr.rel (0) target = $region49
    $region48: #{tpu_custom_call.1} parent=1 // pred_region
      %s94 = ssub.s32 1024, 1024
      %95 = vsyncadd [#allocation12], %s94
      %s96 = sshll.u32 [#allocation11], 4
      %s97 = int_to_ptr.vmem [resolvable:$true] %s96
      %102 = dma.hbm_to_vmem [thread:$0]  %s11, 1024, %s97, [#allocation12], 64, 64, 4
    $region49: #{tpu_custom_call.1} parent=1 // pred_fallthru
      _
    // Predicated region
    $region50: #{tpu_custom_call.1} parent=1 // pred_check
      _
    $region51: #{tpu_custom_call.1} parent=1 // pred_check_branch
      %104 = sbr.rel (0) target = $region53
    $region52: #{tpu_custom_call.1} parent=1 // pred_region
      _
    $region53: #{tpu_custom_call.1} parent=1 // pred_fallthru
      _
    // Predicated region
    $region54: #{tpu_custom_call.1} parent=1 // pred_check
      _
    $region55: #{tpu_custom_call.1} parent=1 // pred_check_branch
      %106 = sbr.rel (0) target = $region57
    $region56: #{tpu_custom_call.1} parent=1 // pred_region
      %107 = dma.done [#allocation3], 256
    $region57: #{tpu_custom_call.1} parent=1 // pred_fallthru
      _
    // Predicated region
    $region58: #{tpu_custom_call.1} parent=1 // pred_check
      _
    $region59: #{tpu_custom_call.1} parent=1 // pred_check_branch
      %109 = sbr.rel (0) target = $region61
    $region60: #{tpu_custom_call.1} parent=1 // pred_region
      %110 = dma.done [#allocation6], 16
    $region61: #{tpu_custom_call.1} parent=1 // pred_fallthru
      _
    // Predicated region
    $region62: #{tpu_custom_call.1} parent=1 // pred_check
      _
    $region63: #{tpu_custom_call.1} parent=1 // pred_check_branch
      %112 = sbr.rel (0) target = $region65
    $region64: #{tpu_custom_call.1} parent=1 // pred_region
      %113 = dma.done [#allocation6], 1024
    $region65: #{tpu_custom_call.1} parent=1 // pred_fallthru
      _
    // Predicated region
    $region66: #{tpu_custom_call.1} parent=1 // pred_check
      _
    $region67: #{tpu_custom_call.1} parent=1 // pred_check_branch
      %115 = sbr.rel (0) target = $region69
    $region68: #{tpu_custom_call.1} parent=1 // pred_region
      %116 = dma.done [#allocation9], 16
    $region69: #{tpu_custom_call.1} parent=1 // pred_fallthru
      _
    // Predicated region
    $region70: #{tpu_custom_call.1} parent=1 // pred_check
      _
    $region71: #{tpu_custom_call.1} parent=1 // pred_check_branch
      %118 = sbr.rel (0) target = $region73
    $region72: #{tpu_custom_call.1} parent=1 // pred_region
      %119 = dma.done [#allocation9], 2048
    $region73: #{tpu_custom_call.1} parent=1 // pred_fallthru
      _
    // Predicated region
    $region74: #{tpu_custom_call.1} parent=1 // pred_check
      _
    $region75: #{tpu_custom_call.1} parent=1 // pred_check_branch
      %121 = sbr.rel (0) target = $region77
    $region76: #{tpu_custom_call.1} parent=1 // pred_region
      %122 = dma.done [#allocation12], 1024
    $region77: #{tpu_custom_call.1} parent=1 // pred_fallthru
      _
    %v124 = vld [vmem:[#allocation2] sm:$0xff]
    %v125 = vld [vmem:[#allocation2 + $0x8] sm:$0xff]
    %v126 = vld [vmem:[%s1] sm:$0x1]
    %v127 = vld [vmem:[#allocation5] sm:$0x1]
    %128 = vadd.xlane.f32.xlu0 %v124
    %v129 = vpop.xlane.xlu0 %128
    %130 = vadd.xlane.f32.xlu0 %v125
    %v131 = vpop.xlane.xlu0 %130
    %v132 = vmul.f32 %v129, 0.03125
    %v133 = vmul.f32 %v131, 0.03125
    %v134 = vsub.f32 %v124, %v132
    %v135 = vsub.f32 %v125, %v133
    %v136 = vmul.f32 %v134, %v134
    %v137 = vmul.f32 %v135, %v135
    %138 = vadd.xlane.f32.xlu0 %v136
    %v139 = vpop.xlane.xlu0 %138
    %140 = vadd.xlane.f32.xlu0 %v137
    %v141 = vpop.xlane.xlu0 %140
    %v142 = vmul.f32 %v132, %v132
    %v143 = vmul.f32 %v133, %v133
    %v144 = vmul.f32 %v142, 96.0
    %v145 = vmul.f32 %v143, 96.0
    %v146 = vsub.f32 %v139, %v144
    %v147 = vsub.f32 %v141, %v145
    %v148 = vmul.f32 %v146, 0.03125
    %v149 = vmul.f32 %v147, 0.03125
    %v150 = vmax.f32 %v148, 0.0
    %v151 = vmax.f32 %v149, 0.0
    %v152 = vadd.f32 %v150, 1e-05
    %v153 = vadd.f32 %v151, 1e-05
    %v154 = vrsqrt.pop %v152
    %v155 = vrsqrt.pop %v153
    %v156 = vmul.f32 %v134, %v154
    %v157 = vmul.f32 %v135, %v155
    %v159 = vlaneseq
    %v160 = vshrl.u32 %v159, 7
    %v161 = vsub.s32 0, %v160
    %v162 = vrot.slane %v126, %v161
    %v164 = vmul.f32 %v156, %v162
    %v165 = vmul.f32 %v157, %v162
    %v167 = vlaneseq
    %v168 = vshrl.u32 %v167, 7
    %v169 = vsub.s32 0, %v168
    %v170 = vrot.slane %v127, %v169
    %v172 = vadd.f32 %v164, %v170
    %v173 = vadd.f32 %v165, %v170
    %v174 = vpack.c.bf16 %v173, %v172
    %v175 = vld [vmem:[#allocation7] sm:$0xf]
    %v176 = vld [vmem:[#allocation7 + $0x4] sm:$0xf]
    %v177 = vld [vmem:[#allocation7 + $0x8] sm:$0xf]
    %v178 = vld [vmem:[#allocation7 + $0xc] sm:$0xf]
    %v179 = vld [vmem:[#allocation7 + $0x10] sm:$0xf]
    %v180 = vld [vmem:[#allocation7 + $0x14] sm:$0xf]
    %v181 = vld [vmem:[#allocation7 + $0x18] sm:$0xf]
    %v182 = vld [vmem:[#allocation7 + $0x1c] sm:$0xf]
    %v183 = vld [vmem:[#allocation7 + $0x20] sm:$0xf]
    %v184 = vld [vmem:[#allocation7 + $0x24] sm:$0xf]
    %v185 = vld [vmem:[#allocation7 + $0x28] sm:$0xf]
    %v186 = vld [vmem:[#allocation7 + $0x2c] sm:$0xf]
    %v187 = vld [vmem:[#allocation7 + $0x30] sm:$0xf]
    %v188 = vld [vmem:[#allocation7 + $0x34] sm:$0xf]
    %v189 = vld [vmem:[#allocation7 + $0x38] sm:$0xf]
    %v190 = vld [vmem:[#allocation7 + $0x3c] sm:$0xf]
    %v191 = vld [vmem:[#allocation8] sm:$0x1]
    %v193 = vlaneseq
    %v194 = vshrl.u32 %v193, 7
    %v195 = vsub.s32 0, %v194
    %v196 = vrot.slane %v191, %v195
    %v214 = vunpack.c.l.b16 %v175
    %v215 = vunpack.c.l.b16 %v176
    %v216 = vunpack.c.l.b16 %v177
    %v217 = vunpack.c.l.b16 %v178
    %v218 = vunpack.c.l.b16 %v179
    %v219 = vunpack.c.l.b16 %v180
    %v220 = vunpack.c.l.b16 %v181
    %v221 = vunpack.c.l.b16 %v182
    %v222 = vunpack.c.l.b16 %v183
    %v223 = vunpack.c.l.b16 %v184
    %v224 = vunpack.c.l.b16 %v185
    %v225 = vunpack.c.l.b16 %v186
    %v226 = vunpack.c.l.b16 %v187
    %v227 = vunpack.c.l.b16 %v188
    %v228 = vunpack.c.l.b16 %v189
    %v229 = vunpack.c.l.b16 %v190
    %v230 = vpack.c.b16 %v215, %v214
    %v231 = vpack.c.b16 %v217, %v216
    %v232 = vpack.c.b16 %v219, %v218
    %v233 = vpack.c.b16 %v221, %v220
    %v234 = vpack.c.b16 %v223, %v222
    %v235 = vpack.c.b16 %v225, %v224
    %v236 = vpack.c.b16 %v227, %v226
    %v237 = vpack.c.b16 %v229, %v228
    %246 = vmatprep.subr.bf16.mxu0 0
    %247 = vmatpush1.bf16.msra.mxu0 %v237
    %248 = vmatprep.subr.bf16.mxu0 0
    %249 = vmatpush1.bf16.msra.mxu0 %v236
    %250 = vmatprep.subr.bf16.mxu0 0
    %251 = vmatpush1.bf16.msra.mxu0 %v235
    %252 = vmatprep.subr.bf16.mxu0 0
    %253 = vmatpush1.bf16.msra.mxu0 %v234
    %254 = vmatprep.subr.bf16.mxu0 0
    %255 = vmatpush1.bf16.msra.mxu0 %v233
    %256 = vmatprep.subr.bf16.mxu0 0
    %257 = vmatpush1.bf16.msra.mxu0 %v232
    %258 = vmatprep.subr.bf16.mxu0 0
    %259 = vmatpush1.bf16.msra.mxu0 %v231
    %260 = vmatprep.subr.bf16.mxu0 0
    %261 = vmatpush1.bf16.msra.mxu0 %v230
    %262 = vmatprep.subr.bf16.mxu0 0
    %263 = vmatpush2.bf16.msra.mxu0 0
    %264 = vmatprep.subr.bf16.mxu0 0
    %265 = vmatpush2.bf16.msra.mxu0 0
    %266 = vmatprep.subr.bf16.mxu0 0
    %267 = vmatpush2.bf16.msra.mxu0 0
    %268 = vmatprep.subr.bf16.mxu0 0
    %269 = vmatpush2.bf16.msra.mxu0 0
    %270 = vmatprep.subr.bf16.mxu0 0
    %271 = vmatpush2.bf16.msra.mxu0 0
    %272 = vmatprep.subr.bf16.mxu0 0
    %273 = vmatpush2.bf16.msra.mxu0 0
    %274 = vmatprep.subr.bf16.mxu0 0
    %275 = vmatpush2.bf16.msra.mxu0 0
    %276 = vmatprep.subr.bf16.mxu0 0
    %277 = vmatpush2.bf16.msra.mxu0 0
    %278 = vmatprep.mubr.bf16.mxu0 0
    %279 = vmatmul.mubr.bf16.gmra.mxu0 %v174
    %v280 = vpop.f32.mrf.mxu0
    %v281 = vadd.f32 %v196, %v280
    %v282 = vpop.f32.mrf.mxu0
    %v283 = vpop.f32.mrf.mxu0
    %v284 = vadd.f32 %v196, %v283
    %v285 = vpop.f32.mrf.mxu0
    %286 = vdwg.mxu0
    %v287 = vxor.u32 %v281, 2147483648
    %v288 = vxor.u32 %v284, 2147483648
    %v289 = vmul.f32 %v287, 1.442695
    %v290 = vpow.pop %v289
    %v291 = vmul.f32 %v288, 1.442695
    %v292 = vpow.pop %v291
    %v293 = vadd.f32 %v290, 1.0
    %v294 = vadd.f32 %v292, 1.0
    %v295 = vrcp.pop %v293
    %v296 = vmul.f32 1.0, %v295
    %v297 = vrcp.pop %v294
    %v298 = vmul.f32 1.0, %v297
    %v299 = vmul.f32 %v281, %v296
    %v300 = vmul.f32 %v284, %v298
    %v301 = vld [vmem:[%s5] sm:$0x1]
    %v302 = vld [vmem:[%s6] sm:$0x1]
    %303 = vadd.xlane.f32.xlu0 %v299
    %v304 = vpop.xlane.xlu0 %303
    %305 = vadd.xlane.f32.xlu0 %v300
    %v306 = vpop.xlane.xlu0 %305
    %v307 = vmul.f32 %v304, 0.015625
    %v308 = vmul.f32 %v306, 0.015625
    %v309 = vsub.f32 %v299, %v307
    %v310 = vsub.f32 %v300, %v308
    %v311 = vmul.f32 %v309, %v309
    %v312 = vmul.f32 %v310, %v310
    %313 = vadd.xlane.f32.xlu0 %v311
    %v314 = vpop.xlane.xlu0 %313
    %315 = vadd.xlane.f32.xlu0 %v312
    %v316 = vpop.xlane.xlu0 %315
    %v317 = vmul.f32 %v307, %v307
    %v318 = vmul.f32 %v308, %v308
    %v319 = vmul.f32 %v317, 64.0
    %v320 = vmul.f32 %v318, 64.0
    %v321 = vsub.f32 %v314, %v319
    %v322 = vsub.f32 %v316, %v320
    %v323 = vmul.f32 %v321, 0.015625
    %v324 = vmul.f32 %v322, 0.015625
    %v325 = vmax.f32 %v323, 0.0
    %v326 = vmax.f32 %v324, 0.0
    %v327 = vadd.f32 %v325, 1e-05
    %v328 = vadd.f32 %v326, 1e-05
    %v329 = vrsqrt.pop %v327
    %v330 = vrsqrt.pop %v328
    %v331 = vmul.f32 %v309, %v329
    %v332 = vmul.f32 %v310, %v330
    %v334 = vlaneseq
    %v335 = vshrl.u32 %v334, 7
    %v336 = vsub.s32 0, %v335
    %v337 = vrot.slane %v301, %v336
    %v339 = vmul.f32 %v331, %v337
    %v340 = vmul.f32 %v332, %v337
    %v342 = vlaneseq
    %v343 = vshrl.u32 %v342, 7
    %v344 = vsub.s32 0, %v343
    %v345 = vrot.slane %v302, %v344
    %v347 = vadd.f32 %v339, %v345
    %v348 = vadd.f32 %v340, %v345
    %v349 = vpack.c.bf16 %v348, %v347
    %v350 = vld [vmem:[#allocation10] sm:$0xf]
    %v351 = vld [vmem:[#allocation10 + $0x4] sm:$0xf]
    %v352 = vld [vmem:[#allocation10 + $0x8] sm:$0xf]
    %v353 = vld [vmem:[#allocation10 + $0xc] sm:$0xf]
    %v354 = vld [vmem:[#allocation10 + $0x10] sm:$0xf]
    %v355 = vld [vmem:[#allocation10 + $0x14] sm:$0xf]
    %v356 = vld [vmem:[#allocation10 + $0x18] sm:$0xf]
    %v357 = vld [vmem:[#allocation10 + $0x1c] sm:$0xf]
    %v358 = vld [vmem:[#allocation10 + $0x20] sm:$0xf]
    %v359 = vld [vmem:[#allocation10 + $0x24] sm:$0xf]
    %v360 = vld [vmem:[#allocation10 + $0x28] sm:$0xf]
    %v361 = vld [vmem:[#allocation10 + $0x2c] sm:$0xf]
    %v362 = vld [vmem:[#allocation10 + $0x30] sm:$0xf]
    %v363 = vld [vmem:[#allocation10 + $0x34] sm:$0xf]
    %v364 = vld [vmem:[#allocation10 + $0x38] sm:$0xf]
    %v365 = vld [vmem:[#allocation10 + $0x3c] sm:$0xf]
    %v366 = vld [vmem:[%s8] sm:$0x1]
    %v368 = vlaneseq
    %v369 = vshrl.u32 %v368, 7
    %v370 = vsub.s32 0, %v369
    %v371 = vrot.slane %v366, %v370
    %v389 = vunpack.c.l.b16 %v350
    %v390 = vunpack.c.l.b16 %v351
    %v391 = vunpack.c.l.b16 %v352
    %v392 = vunpack.c.l.b16 %v353
    %v393 = vunpack.c.l.b16 %v354
    %v394 = vunpack.c.l.b16 %v355
    %v395 = vunpack.c.l.b16 %v356
    %v396 = vunpack.c.l.b16 %v357
    %v397 = vunpack.c.l.b16 %v358
    %v398 = vunpack.c.l.b16 %v359
    %v399 = vunpack.c.l.b16 %v360
    %v400 = vunpack.c.l.b16 %v361
    %v401 = vunpack.c.l.b16 %v362
    %v402 = vunpack.c.l.b16 %v363
    %v403 = vunpack.c.l.b16 %v364
    %v404 = vunpack.c.l.b16 %v365
    %v405 = vpack.c.b16 %v390, %v389
    %v406 = vpack.c.b16 %v392, %v391
    %v407 = vpack.c.b16 %v394, %v393
    %v408 = vpack.c.b16 %v396, %v395
    %v409 = vpack.c.b16 %v398, %v397
    %v410 = vpack.c.b16 %v400, %v399
    %v411 = vpack.c.b16 %v402, %v401
    %v412 = vpack.c.b16 %v404, %v403
    %421 = vmatprep.subr.bf16.mxu0 0
    %422 = vmatpush1.bf16.msra.mxu0 %v412
    %423 = vmatprep.subr.bf16.mxu0 0
    %424 = vmatpush1.bf16.msra.mxu0 %v411
    %425 = vmatprep.subr.bf16.mxu0 0
    %426 = vmatpush1.bf16.msra.mxu0 %v410
    %427 = vmatprep.subr.bf16.mxu0 0
    %428 = vmatpush1.bf16.msra.mxu0 %v409
    %429 = vmatprep.subr.bf16.mxu0 0
    %430 = vmatpush1.bf16.msra.mxu0 %v408
    %431 = vmatprep.subr.bf16.mxu0 0
    %432 = vmatpush1.bf16.msra.mxu0 %v407
    %433 = vmatprep.subr.bf16.mxu0 0
    %434 = vmatpush1.bf16.msra.mxu0 %v406
    %435 = vmatprep.subr.bf16.mxu0 0
    %436 = vmatpush1.bf16.msra.mxu0 %v405
    %437 = vmatprep.subr.bf16.mxu0 0
    %438 = vmatpush2.bf16.msra.mxu0 0
    %439 = vmatprep.subr.bf16.mxu0 0
    %440 = vmatpush2.bf16.msra.mxu0 0
    %441 = vmatprep.subr.bf16.mxu0 0
    %442 = vmatpush2.bf16.msra.mxu0 0
    %443 = vmatprep.subr.bf16.mxu0 0
    %444 = vmatpush2.bf16.msra.mxu0 0
    %445 = vmatprep.subr.bf16.mxu0 0
    %446 = vmatpush2.bf16.msra.mxu0 0
    %447 = vmatprep.subr.bf16.mxu0 0
    %448 = vmatpush2.bf16.msra.mxu0 0
    %449 = vmatprep.subr.bf16.mxu0 0
    %450 = vmatpush2.bf16.msra.mxu0 0
    %451 = vmatprep.subr.bf16.mxu0 0
    %452 = vmatpush2.bf16.msra.mxu0 0
    %453 = vmatprep.mubr.bf16.mxu0 0
    %454 = vmatmul.mubr.bf16.gmra.mxu0 %v349
    %v455 = vpop.f32.mrf.mxu0
    %v456 = vadd.f32 %v371, %v455
    %v457 = vpop.f32.mrf.mxu0
    %v458 = vpop.f32.mrf.mxu0
    %v459 = vadd.f32 %v371, %v458
    %v460 = vpop.f32.mrf.mxu0
    %461 = vdwg.mxu0
    %v462 = vxor.u32 %v456, 2147483648
    %v463 = vxor.u32 %v459, 2147483648
    %v464 = vmul.f32 %v462, 1.442695
    %v465 = vpow.pop %v464
    %v466 = vmul.f32 %v463, 1.442695
    %v467 = vpow.pop %v466
    %v468 = vadd.f32 %v465, 1.0
    %v469 = vadd.f32 %v467, 1.0
    %v470 = vrcp.pop %v468
    %v471 = vmul.f32 1.0, %v470
    %v472 = vrcp.pop %v469
    %v473 = vmul.f32 1.0, %v472
    %v474 = vmul.f32 %v456, %v471
    %v475 = vmul.f32 %v459, %v473
    %v476 = vadd.f32 %v474, %v299
    %v477 = vadd.f32 %v475, %v300
    %s478 = scalar_lea.vmem %s5, 1
    %v479 = vld [vmem:[%s478] sm:$0x1]
    %s480 = scalar_lea.vmem %s6, 1
    %v481 = vld [vmem:[%s480] sm:$0x1]
    %482 = vadd.xlane.f32.xlu0 %v476
    %v483 = vpop.xlane.xlu0 %482
    %484 = vadd.xlane.f32.xlu0 %v477
    %v485 = vpop.xlane.xlu0 %484
    %v486 = vmul.f32 %v483, 0.015625
    %v487 = vmul.f32 %v485, 0.015625
    %v488 = vsub.f32 %v476, %v486
    %v489 = vsub.f32 %v477, %v487
    %v490 = vmul.f32 %v488, %v488
    %v491 = vmul.f32 %v489, %v489
    %492 = vadd.xlane.f32.xlu0 %v490
    %v493 = vpop.xlane.xlu0 %492
    %494 = vadd.xlane.f32.xlu0 %v491
    %v495 = vpop.xlane.xlu0 %494
    %v496 = vmul.f32 %v486, %v486
    %v497 = vmul.f32 %v487, %v487
    %v498 = vmul.f32 %v496, 64.0
    %v499 = vmul.f32 %v497, 64.0
    %v500 = vsub.f32 %v493, %v498
    %v501 = vsub.f32 %v495, %v499
    %v502 = vmul.f32 %v500, 0.015625
    %v503 = vmul.f32 %v501, 0.015625
    %v504 = vmax.f32 %v502, 0.0
    %v505 = vmax.f32 %v503, 0.0
    %v506 = vadd.f32 %v504, 1e-05
    %v507 = vadd.f32 %v505, 1e-05
    %v508 = vrsqrt.pop %v506
    %v509 = vrsqrt.pop %v507
    %v510 = vmul.f32 %v488, %v508
    %v511 = vmul.f32 %v489, %v509
    %v513 = vlaneseq
    %v514 = vshrl.u32 %v513, 7
    %v515 = vsub.s32 0, %v514
    %v516 = vrot.slane %v479, %v515
    %v518 = vmul.f32 %v510, %v516
    %v519 = vmul.f32 %v511, %v516
    %v521 = vlaneseq
    %v522 = vshrl.u32 %v521, 7
    %v523 = vsub.s32 0, %v522
    %v524 = vrot.slane %v481, %v523
    %v526 = vadd.f32 %v518, %v524
    %v527 = vadd.f32 %v519, %v524
    %v528 = vpack.c.bf16 %v527, %v526
    %s529 = scalar_lea.vmem [#allocation10], 64
    %v530 = vld [vmem:[%s529] sm:$0xf]
    %v531 = vld [vmem:[%s529 + $0x4] sm:$0xf]
    %v532 = vld [vmem:[%s529 + $0x8] sm:$0xf]
    %v533 = vld [vmem:[%s529 + $0xc] sm:$0xf]
    %v534 = vld [vmem:[%s529 + $0x10] sm:$0xf]
    %v535 = vld [vmem:[%s529 + $0x14] sm:$0xf]
    %v536 = vld [vmem:[%s529 + $0x18] sm:$0xf]
    %v537 = vld [vmem:[%s529 + $0x1c] sm:$0xf]
    %v538 = vld [vmem:[%s529 + $0x20] sm:$0xf]
    %v539 = vld [vmem:[%s529 + $0x24] sm:$0xf]
    %v540 = vld [vmem:[%s529 + $0x28] sm:$0xf]
    %v541 = vld [vmem:[%s529 + $0x2c] sm:$0xf]
    %v542 = vld [vmem:[%s529 + $0x30] sm:$0xf]
    %v543 = vld [vmem:[%s529 + $0x34] sm:$0xf]
    %v544 = vld [vmem:[%s529 + $0x38] sm:$0xf]
    %v545 = vld [vmem:[%s529 + $0x3c] sm:$0xf]
    %s546 = scalar_lea.vmem %s8, 1
    %v547 = vld [vmem:[%s546] sm:$0x1]
    %v549 = vlaneseq
    %v550 = vshrl.u32 %v549, 7
    %v551 = vsub.s32 0, %v550
    %v552 = vrot.slane %v547, %v551
    %v570 = vunpack.c.l.b16 %v530
    %v571 = vunpack.c.l.b16 %v531
    %v572 = vunpack.c.l.b16 %v532
    %v573 = vunpack.c.l.b16 %v533
    %v574 = vunpack.c.l.b16 %v534
    %v575 = vunpack.c.l.b16 %v535
    %v576 = vunpack.c.l.b16 %v536
    %v577 = vunpack.c.l.b16 %v537
    %v578 = vunpack.c.l.b16 %v538
    %v579 = vunpack.c.l.b16 %v539
    %v580 = vunpack.c.l.b16 %v540
    %v581 = vunpack.c.l.b16 %v541
    %v582 = vunpack.c.l.b16 %v542
    %v583 = vunpack.c.l.b16 %v543
    %v584 = vunpack.c.l.b16 %v544
    %v585 = vunpack.c.l.b16 %v545
    %v586 = vpack.c.b16 %v571, %v570
    %v587 = vpack.c.b16 %v573, %v572
    %v588 = vpack.c.b16 %v575, %v574
    %v589 = vpack.c.b16 %v577, %v576
    %v590 = vpack.c.b16 %v579, %v578
    %v591 = vpack.c.b16 %v581, %v580
    %v592 = vpack.c.b16 %v583, %v582
    %v593 = vpack.c.b16 %v585, %v584
    %602 = vmatprep.subr.bf16.mxu0 0
    %603 = vmatpush1.bf16.msra.mxu0 %v593
    %604 = vmatprep.subr.bf16.mxu0 0
    %605 = vmatpush1.bf16.msra.mxu0 %v592
    %606 = vmatprep.subr.bf16.mxu0 0
    %607 = vmatpush1.bf16.msra.mxu0 %v591
    %608 = vmatprep.subr.bf16.mxu0 0
    %609 = vmatpush1.bf16.msra.mxu0 %v590
    %610 = vmatprep.subr.bf16.mxu0 0
    %611 = vmatpush1.bf16.msra.mxu0 %v589
    %612 = vmatprep.subr.bf16.mxu0 0
    %613 = vmatpush1.bf16.msra.mxu0 %v588
    %614 = vmatprep.subr.bf16.mxu0 0
    %615 = vmatpush1.bf16.msra.mxu0 %v587
    %616 = vmatprep.subr.bf16.mxu0 0
    %617 = vmatpush1.bf16.msra.mxu0 %v586
    %618 = vmatprep.subr.bf16.mxu0 0
    %619 = vmatpush2.bf16.msra.mxu0 0
    %620 = vmatprep.subr.bf16.mxu0 0
    %621 = vmatpush2.bf16.msra.mxu0 0
    %622 = vmatprep.subr.bf16.mxu0 0
    %623 = vmatpush2.bf16.msra.mxu0 0
    %624 = vmatprep.subr.bf16.mxu0 0
    %625 = vmatpush2.bf16.msra.mxu0 0
    %626 = vmatprep.subr.bf16.mxu0 0
    %627 = vmatpush2.bf16.msra.mxu0 0
    %628 = vmatprep.subr.bf16.mxu0 0
    %629 = vmatpush2.bf16.msra.mxu0 0
    %630 = vmatprep.subr.bf16.mxu0 0
    %631 = vmatpush2.bf16.msra.mxu0 0
    %632 = vmatprep.subr.bf16.mxu0 0
    %633 = vmatpush2.bf16.msra.mxu0 0
    %634 = vmatprep.mubr.bf16.mxu0 0
    %635 = vmatmul.mubr.bf16.gmra.mxu0 %v528
    %v636 = vpop.f32.mrf.mxu0
    %v637 = vadd.f32 %v552, %v636
    %v638 = vpop.f32.mrf.mxu0
    %v639 = vpop.f32.mrf.mxu0
    %v640 = vadd.f32 %v552, %v639
    %v641 = vpop.f32.mrf.mxu0
    %642 = vdwg.mxu0
    %v643 = vxor.u32 %v637, 2147483648
    %v644 = vxor.u32 %v640, 2147483648
    %v645 = vmul.f32 %v643, 1.442695
    %v646 = vpow.pop %v645
    %v647 = vmul.f32 %v644, 1.442695
    %v648 = vpow.pop %v647
    %v649 = vadd.f32 %v646, 1.0
    %v650 = vadd.f32 %v648, 1.0
    %v651 = vrcp.pop %v649
    %v652 = vmul.f32 1.0, %v651
    %v653 = vrcp.pop %v650
    %v654 = vmul.f32 1.0, %v653
    %v655 = vmul.f32 %v637, %v652
    %v656 = vmul.f32 %v640, %v654
    %v657 = vadd.f32 %v655, %v476
    %v658 = vadd.f32 %v656, %v477
    %v659 = vld [vmem:[%s9] sm:$0x1]
    %v660 = vld [vmem:[%s10] sm:$0x1]
    %661 = vadd.xlane.f32.xlu0 %v657
    %v662 = vpop.xlane.xlu0 %661
    %663 = vadd.xlane.f32.xlu0 %v658
    %v664 = vpop.xlane.xlu0 %663
    %v665 = vmul.f32 %v662, 0.015625
    %v666 = vmul.f32 %v664, 0.015625
    %v667 = vsub.f32 %v657, %v665
    %v668 = vsub.f32 %v658, %v666
    %v669 = vmul.f32 %v667, %v667
    %v670 = vmul.f32 %v668, %v668
    %671 = vadd.xlane.f32.xlu0 %v669
    %v672 = vpop.xlane.xlu0 %671
    %673 = vadd.xlane.f32.xlu0 %v670
    %v674 = vpop.xlane.xlu0 %673
    %v675 = vmul.f32 %v665, %v665
    %v676 = vmul.f32 %v666, %v666
    %v677 = vmul.f32 %v675, 64.0
    %v678 = vmul.f32 %v676, 64.0
    %v679 = vsub.f32 %v672, %v677
    %v680 = vsub.f32 %v674, %v678
    %v681 = vmul.f32 %v679, 0.015625
    %v682 = vmul.f32 %v680, 0.015625
    %v683 = vmax.f32 %v681, 0.0
    %v684 = vmax.f32 %v682, 0.0
    %v685 = vadd.f32 %v683, 1e-05
    %v686 = vadd.f32 %v684, 1e-05
    %v687 = vrsqrt.pop %v685
    %v688 = vrsqrt.pop %v686
    %v689 = vmul.f32 %v667, %v687
    %v690 = vmul.f32 %v668, %v688
    %v692 = vlaneseq
    %v693 = vshrl.u32 %v692, 7
    %v694 = vsub.s32 0, %v693
    %v695 = vrot.slane %v659, %v694
    %v697 = vmul.f32 %v689, %v695
    %v698 = vmul.f32 %v690, %v695
    %v700 = vlaneseq
    %v701 = vshrl.u32 %v700, 7
    %v702 = vsub.s32 0, %v701
    %v703 = vrot.slane %v660, %v702
    %v705 = vadd.f32 %v697, %v703
    %v706 = vadd.f32 %v698, %v703
    %v707 = vpack.c.bf16 %v706, %v705
    %v708 = vld [vmem:[#allocation11] sm:$0xf]
    %v709 = vld [vmem:[#allocation11 + $0x4] sm:$0xf]
    %v710 = vld [vmem:[#allocation11 + $0x8] sm:$0xf]
    %v711 = vld [vmem:[#allocation11 + $0xc] sm:$0xf]
    %v712 = vld [vmem:[#allocation11 + $0x10] sm:$0xf]
    %v713 = vld [vmem:[#allocation11 + $0x14] sm:$0xf]
    %v714 = vld [vmem:[#allocation11 + $0x18] sm:$0xf]
    %v715 = vld [vmem:[#allocation11 + $0x1c] sm:$0xf]
    %v716 = vld [vmem:[#allocation11 + $0x20] sm:$0xf]
    %v717 = vld [vmem:[#allocation11 + $0x24] sm:$0xf]
    %v718 = vld [vmem:[#allocation11 + $0x28] sm:$0xf]
    %v719 = vld [vmem:[#allocation11 + $0x2c] sm:$0xf]
    %v720 = vld [vmem:[#allocation11 + $0x30] sm:$0xf]
    %v721 = vld [vmem:[#allocation11 + $0x34] sm:$0xf]
    %v722 = vld [vmem:[#allocation11 + $0x38] sm:$0xf]
    %v723 = vld [vmem:[#allocation11 + $0x3c] sm:$0xf]
    %v724 = vld [vmem:[%s12] sm:$0x1]
    %v726 = vlaneseq
    %v727 = vshrl.u32 %v726, 7
    %v728 = vsub.s32 0, %v727
    %v729 = vrot.slane %v724, %v728
    %v747 = vunpack.c.l.b16 %v708
    %v748 = vunpack.c.l.b16 %v709
    %v749 = vunpack.c.l.b16 %v710
    %v750 = vunpack.c.l.b16 %v711
    %v751 = vunpack.c.l.b16 %v712
    %v752 = vunpack.c.l.b16 %v713
    %v753 = vunpack.c.l.b16 %v714
    %v754 = vunpack.c.l.b16 %v715
    %v755 = vunpack.c.l.b16 %v716
    %v756 = vunpack.c.l.b16 %v717
    %v757 = vunpack.c.l.b16 %v718
    %v758 = vunpack.c.l.b16 %v719
    %v759 = vunpack.c.l.b16 %v720
    %v760 = vunpack.c.l.b16 %v721
    %v761 = vunpack.c.l.b16 %v722
    %v762 = vunpack.c.l.b16 %v723
    %v763 = vpack.c.b16 %v748, %v747
    %v764 = vpack.c.b16 %v750, %v749
    %v765 = vpack.c.b16 %v752, %v751
    %v766 = vpack.c.b16 %v754, %v753
    %v767 = vpack.c.b16 %v756, %v755
    %v768 = vpack.c.b16 %v758, %v757
    %v769 = vpack.c.b16 %v760, %v759
    %v770 = vpack.c.b16 %v762, %v761
    %779 = vmatprep.subr.bf16.mxu0 0
    %780 = vmatpush1.bf16.msra.mxu0 %v770
    %781 = vmatprep.subr.bf16.mxu0 0
    %782 = vmatpush1.bf16.msra.mxu0 %v769
    %783 = vmatprep.subr.bf16.mxu0 0
    %784 = vmatpush1.bf16.msra.mxu0 %v768
    %785 = vmatprep.subr.bf16.mxu0 0
    %786 = vmatpush1.bf16.msra.mxu0 %v767
    %787 = vmatprep.subr.bf16.mxu0 0
    %788 = vmatpush1.bf16.msra.mxu0 %v766
    %789 = vmatprep.subr.bf16.mxu0 0
    %790 = vmatpush1.bf16.msra.mxu0 %v765
    %791 = vmatprep.subr.bf16.mxu0 0
    %792 = vmatpush1.bf16.msra.mxu0 %v764
    %793 = vmatprep.subr.bf16.mxu0 0
    %794 = vmatpush1.bf16.msra.mxu0 %v763
    %795 = vmatprep.subr.bf16.mxu0 0
    %796 = vmatpush2.bf16.msra.mxu0 0
    %797 = vmatprep.subr.bf16.mxu0 0
    %798 = vmatpush2.bf16.msra.mxu0 0
    %799 = vmatprep.subr.bf16.mxu0 0
    %800 = vmatpush2.bf16.msra.mxu0 0
    %801 = vmatprep.subr.bf16.mxu0 0
    %802 = vmatpush2.bf16.msra.mxu0 0
    %803 = vmatprep.subr.bf16.mxu0 0
    %804 = vmatpush2.bf16.msra.mxu0 0
    %805 = vmatprep.subr.bf16.mxu0 0
    %806 = vmatpush2.bf16.msra.mxu0 0
    %807 = vmatprep.subr.bf16.mxu0 0
    %808 = vmatpush2.bf16.msra.mxu0 0
    %809 = vmatprep.subr.bf16.mxu0 0
    %810 = vmatpush2.bf16.msra.mxu0 0
    %811 = vmatprep.mubr.bf16.mxu0 0
    %812 = vmatmul.mubr.bf16.gmra.mxu0 %v707
    %v813 = vpop.f32.mrf.mxu0
    %v814 = vadd.f32 %v729, %v813
    %v815 = vpop.f32.mrf.mxu0
    %v816 = vpop.f32.mrf.mxu0
    %v817 = vadd.f32 %v729, %v816
    %v818 = vpop.f32.mrf.mxu0
    %819 = vdwg.mxu0
    %820 = vst [vmem:[#allocation13] sm:$0xff] %v814
    %821 = vst [vmem:[#allocation13 + $0x8] sm:$0xff] %v817
    // Predicated region
    $region78: #{tpu_custom_call.1} parent=1 // pred_check
      _
    $region79: #{tpu_custom_call.1} parent=1 // pred_check_branch
      %823 = sbr.rel (0) target = $region81
    $region80: #{tpu_custom_call.1} parent=1 // pred_region
      %s825 = ssub.s32 256, 256
      %826 = vsyncadd [#allocation4], %s825
      %s827 = sshll.u32 [#allocation13], 4
      %s828 = int_to_ptr.vmem [resolvable:$true] %s827
      %833 = dma.vmem_to_hbm [thread:$0]  %s828, 256, %s13, [#allocation4], 128, 128, 8
    $region81: #{tpu_custom_call.1} parent=1 // pred_fallthru
      _
    // Predicated region
    $region82: #{tpu_custom_call.1} parent=1 // pred_check
      _
    $region83: #{tpu_custom_call.1} parent=1 // pred_check_branch
      %835 = sbr.rel (0) target = $region85
    $region84: #{tpu_custom_call.1} parent=1 // pred_region
      %836 = dma.done [#allocation4], 256
    $region85: #{tpu_custom_call.1} parent=1 // pred_fallthru
      _
    %837 = vsyncpa [#allocation3], 1
    %838 = vsyncpa [#allocation6], 1
    %839 = vsyncpa [#allocation9], 1
    %840 = vsyncpa [#allocation12], 1
    %841 = vsyncpa [#allocation4], 1

</llo_original>
